<compile_context>
chip_gen: v7x
topology: tpu7x:2x2x1
jax: 0.10.0
libtpu: 0.0.40
codegen_flags: <defaults>
</compile_context>

<pallas_src>
import math

import jax
import jax.numpy as jnp
from jax.experimental import pallas as pl
from jax.experimental.pallas import tpu as pltpu


def _round_up(n, m):
    return ((n + m - 1) // m) * m


def _const_index_map(ndim):
    # Bind ndim explicitly (avoids the late-binding closure landmine).
    return lambda i: (0,) * ndim


def _num_tensorcores():
    """Best-effort TensorCores-per-chip (v7x=2, earlier gens=1)."""
    try:
        kind = jax.devices()[0].device_kind.lower()
    except Exception:
        return 1
    return 2 if ("v7" in kind or "7x" in kind) else 1


def _select_tiling(batch, tile_b, num_cores):
    """Fit the tile to the batch (minimal padding); on 2-TC chips prefer an even
    tile count so the 'parallel' batch axis shards across both cores."""
    aligned = _round_up(max(batch, 1), 8)
    tile_cap = _round_up(max(8, min(tile_b, aligned)), 8)
    num_tiles = pl.cdiv(aligned, tile_cap)
    if num_cores > 1 and aligned >= 16 and num_tiles % 2 == 1:
        num_tiles += 1
    tile = _round_up(pl.cdiv(aligned, num_tiles), 8)
    num_tiles = pl.cdiv(aligned, tile)  # drop a fully-empty trailing tile, if any
    return tile, num_tiles, tile * num_tiles


def _make_mlp_kernel(num_layers):
    """Kernel over refs: (x, w0, b0, w1, b1, ..., w_{L-1}, b_{L-1}, out)."""

    def kernel(*refs):
        x_ref = refs[0]
        o_ref = refs[-1]
        wb = refs[1:-1]

        cur = x_ref[...]                       # bf16 (MXU-native operand)
        for i in range(num_layers):
            w = wb[2 * i][...]                 # (in, out) bf16, VMEM-resident
            b = wb[2 * i + 1][...]             # (1, out)  f32
            acc = jnp.dot(cur, w, preferred_element_type=jnp.float32) + b
            if i < num_layers - 1:
                cur = jnp.tanh(acc).astype(jnp.bfloat16)
            else:
                cur = acc                      # final layer stays f32
        o_ref[...] = cur.astype(o_ref.dtype)

    return kernel


def baseline_forward(x, params, *, tile_b=1024):
    """params: list of (w, b) with w shaped (in, out), b shaped (1, out).

    Matmuls use bf16 operands / f32 accumulation (intentional precision trade);
    returns (B, out_dim) float32."""
    batch = x.shape[0]
    x2d = x.reshape(batch, -1).astype(jnp.bfloat16)   # glue: torch x.view(B, -1)
    feat = x2d.shape[1]

    num_layers = len(params)
    out_dim = params[-1][0].shape[1]

    kparams = [(w.astype(jnp.bfloat16), b.astype(jnp.float32).reshape(1, -1))
               for w, b in params]

    # ---- batch tiling: fitted to the 8-aligned batch, 1-D grid ----
    tile, num_tiles, b_pad = _select_tiling(batch, tile_b, _num_tensorcores())
    if b_pad != batch:
        x2d = jnp.pad(x2d, ((0, b_pad - batch), (0, 0)))

    flat_args = [x2d]
    for w, b in kparams:
        flat_args.append(w)
        flat_args.append(b)

    in_specs = [pl.BlockSpec((tile, feat), lambda i: (i, 0))]
    for w, b in kparams:
        in_specs.append(pl.BlockSpec(w.shape, _const_index_map(w.ndim)))
        in_specs.append(pl.BlockSpec(b.shape, _const_index_map(b.ndim)))
    out_spec = pl.BlockSpec((tile, out_dim), lambda i: (i, 0))

    # ---- advisory cost estimate so XLA can schedule around the custom call ----
    flops = sum(2 * b_pad * w.shape[0] * w.shape[1] for w, _ in kparams)
    trans = sum(b_pad * w.shape[1] for w, _ in kparams[:-1])
    bytes_accessed = (x2d.size * 2 + b_pad * out_dim * 4
                      + sum(w.size * 2 + b.size * 4 for w, b in kparams))
    cost = pl.CostEstimate(flops=int(flops), transcendentals=int(trans),
                           bytes_accessed=int(bytes_accessed))

    # ---- VMEM budget: only raise the limit when very large tiles need it ----
    widest = max([feat] + [w.shape[1] for w, _ in kparams])
    vmem_need = 2 * (tile * feat * 2 + tile * out_dim * 4)      # dbl-buffered x/out
    vmem_need += sum(w.size * 2 + b.size * 4 for w, b in kparams)
    vmem_need += 3 * tile * widest * 4                           # live activations
    cp_kwargs = dict(dimension_semantics=("parallel",))
    if vmem_need > (12 << 20):      # would brush v5e's 16 MiB default scoped VMEM
        cp_kwargs["vmem_limit_bytes"] = int(min(2 * vmem_need, 60 << 20))

    out = pl.pallas_call(
        _make_mlp_kernel(num_layers),
        out_shape=jax.ShapeDtypeStruct((b_pad, out_dim), jnp.float32),
        grid=(num_tiles,),
        in_specs=in_specs,
        out_specs=out_spec,
        compiler_params=pltpu.CompilerParams(**cp_kwargs),
        cost_estimate=cost,
    )(*flat_args)

    return out[:batch]


def init_params(cs, key):
    """Deterministic init matching nn.Linear default (U(-1/sqrt(in), 1/sqrt(in)))."""
    dims = list(cs) + [8]  # hidden layers from cs, final Linear(cs[-1], 8)
    params = []
    for i in range(len(dims) - 1):
        fan_in, fan_out = dims[i], dims[i + 1]
        key, kw, kb = jax.random.split(key, 3)
        bound = 1.0 / math.sqrt(fan_in)
        w = jax.random.uniform(
            kw, (fan_in, fan_out), jnp.float32, minval=-bound, maxval=bound
        )
        b = jax.random.uniform(
            kb, (1, fan_out), jnp.float32, minval=-bound, maxval=bound
        )
        params.append((w, b))
    return params


if __name__ == "__main__":
    key = jax.random.PRNGKey(0)
    k_x, k_p, k_x2 = jax.random.split(key, 3)

    # Small input consistent with forward's flatten: (B=2, C=4, H=4, W=4) -> (2, 64)
    x = jax.random.normal(k_x, (2, 4, 4, 4), dtype=jnp.float32)
    cs = [64, 32, 16]  # cs[0] must equal flattened feature dim (64)
    params = init_params(cs, k_p)

    def ref_forward(xin):
        # Pure-JAX reference matching the kernel's bf16-operand / f32-accumulate
        # arithmetic (the bf16 read stream is an intentional precision trade).
        cur = xin.reshape(xin.shape[0], -1).astype(jnp.bfloat16)
        for i, (w, b) in enumerate(params):
            acc = jnp.dot(cur, w.astype(jnp.bfloat16),
                          preferred_element_type=jnp.float32) + b
            if i < len(params) - 1:
                cur = jnp.tanh(acc).astype(jnp.bfloat16)
            else:
                cur = acc
        return cur

    out = jax.block_until_ready(baseline_forward(x, params))
    ref = ref_forward(x)
    assert out.shape == (2, 8)
    assert jnp.allclose(out, ref, atol=2e-3, rtol=2e-3)

    # Larger batch: exercises batch-fitted tiling (grid > 1), padded tail rows,
    # VMEM-resident weights, and the (even-tile-count on v7x) path.
    x_big = jax.random.normal(k_x2, (300, 4, 4, 4), dtype=jnp.float32)
    ref_big = ref_forward(x_big)

    out_big = jax.block_until_ready(baseline_forward(x_big, params, tile_b=64))
    assert out_big.shape == (300, 8)
    assert jnp.allclose(out_big, ref_big, atol=2e-3, rtol=2e-3)

    # Default (large-tile) path on the same batch.
    out_big2 = jax.block_until_ready(baseline_forward(x_big, params))
    assert out_big2.shape == (300, 8)
    assert jnp.allclose(out_big2, ref_big, atol=2e-3, rtol=2e-3)

    print("KERNEL_OK")
</pallas_src>

<mosaic_0001>
module attributes {stable_mosaic.version = 11 : i64} {
  func.func @kernel(%arg0: i32, %arg1: memref<8x64xbf16, #tpu.memory_space<vmem>>, %arg2: memref<64x32xbf16, #tpu.memory_space<vmem>>, %arg3: memref<1x32xf32, #tpu.memory_space<vmem>>, %arg4: memref<32x16xbf16, #tpu.memory_space<vmem>>, %arg5: memref<1x16xf32, #tpu.memory_space<vmem>>, %arg6: memref<16x8xbf16, #tpu.memory_space<vmem>>, %arg7: memref<1x8xf32, #tpu.memory_space<vmem>>, %arg8: memref<8x8xf32, #tpu.memory_space<vmem>>) attributes {dimension_semantics = [#tpu.dimension_semantics<parallel>], iteration_bounds = array<i64: 1>, scalar_prefetch = 0 : i64, scratch_operands = 0 : i64, tpu.core_type = #tpu.core_type<tc>, window_params = [{transform_indices = @transform_0, window_bounds = array<i64: 8, 64>}, {pipeline_mode = #tpu.pipeline_mode<synchronous>, transform_indices = @transform_1, window_bounds = array<i64: 64, 32>}, {pipeline_mode = #tpu.pipeline_mode<synchronous>, transform_indices = @transform_2, window_bounds = array<i64: 1, 32>}, {pipeline_mode = #tpu.pipeline_mode<synchronous>, transform_indices = @transform_3, window_bounds = array<i64: 32, 16>}, {pipeline_mode = #tpu.pipeline_mode<synchronous>, transform_indices = @transform_4, window_bounds = array<i64: 1, 16>}, {pipeline_mode = #tpu.pipeline_mode<synchronous>, transform_indices = @transform_5, window_bounds = array<i64: 16, 8>}, {pipeline_mode = #tpu.pipeline_mode<synchronous>, transform_indices = @transform_6, window_bounds = array<i64: 1, 8>}, {transform_indices = @transform_7, window_bounds = array<i64: 8, 8>}]} {
    %c0 = arith.constant 0 : index
    %c0_0 = arith.constant 0 : index
    %0 = vector.load %arg1[%c0, %c0_0] : memref<8x64xbf16, #tpu.memory_space<vmem>>, vector<8x64xbf16>
    %c0_1 = arith.constant 0 : index
    %c0_2 = arith.constant 0 : index
    %1 = vector.load %arg2[%c0_1, %c0_2] : memref<64x32xbf16, #tpu.memory_space<vmem>>, vector<64x32xbf16>
    %c0_3 = arith.constant 0 : index
    %c0_4 = arith.constant 0 : index
    %2 = vector.load %arg3[%c0_3, %c0_4] : memref<1x32xf32, #tpu.memory_space<vmem>>, vector<1x32xf32>
    %cst = arith.constant dense<0.000000e+00> : vector<8x32xf32>
    %3 = tpu.matmul %0, %1, %cst {dimension_numbers = #tpu.dot_dimension_numbers<[1], [0], [0], [1], [0, 0, 1, 1], [], []>} : vector<8x64xbf16>, vector<64x32xbf16>, vector<8x32xf32> -> vector<8x32xf32>
    %4 = vector.broadcast %2 : vector<1x32xf32> to vector<8x32xf32>
    %5 = arith.addf %3, %4 : vector<8x32xf32>
    %6 = math.tanh %5 : vector<8x32xf32>
    %7 = arith.truncf %6 : vector<8x32xf32> to vector<8x32xbf16>
    %c0_5 = arith.constant 0 : index
    %c0_6 = arith.constant 0 : index
    %8 = vector.load %arg4[%c0_5, %c0_6] : memref<32x16xbf16, #tpu.memory_space<vmem>>, vector<32x16xbf16>
    %c0_7 = arith.constant 0 : index
    %c0_8 = arith.constant 0 : index
    %9 = vector.load %arg5[%c0_7, %c0_8] : memref<1x16xf32, #tpu.memory_space<vmem>>, vector<1x16xf32>
    %cst_9 = arith.constant dense<0.000000e+00> : vector<8x16xf32>
    %10 = tpu.matmul %7, %8, %cst_9 {dimension_numbers = #tpu.dot_dimension_numbers<[1], [0], [0], [1], [0, 0, 1, 1], [], []>} : vector<8x32xbf16>, vector<32x16xbf16>, vector<8x16xf32> -> vector<8x16xf32>
    %11 = vector.broadcast %9 : vector<1x16xf32> to vector<8x16xf32>
    %12 = arith.addf %10, %11 : vector<8x16xf32>
    %13 = math.tanh %12 : vector<8x16xf32>
    %14 = arith.truncf %13 : vector<8x16xf32> to vector<8x16xbf16>
    %c0_10 = arith.constant 0 : index
    %c0_11 = arith.constant 0 : index
    %15 = vector.load %arg6[%c0_10, %c0_11] : memref<16x8xbf16, #tpu.memory_space<vmem>>, vector<16x8xbf16>
    %c0_12 = arith.constant 0 : index
    %c0_13 = arith.constant 0 : index
    %16 = vector.load %arg7[%c0_12, %c0_13] : memref<1x8xf32, #tpu.memory_space<vmem>>, vector<1x8xf32>
    %cst_14 = arith.constant dense<0.000000e+00> : vector<8x8xf32>
    %17 = tpu.matmul %14, %15, %cst_14 {dimension_numbers = #tpu.dot_dimension_numbers<[1], [0], [0], [1], [0, 0, 1, 1], [], []>} : vector<8x16xbf16>, vector<16x8xbf16>, vector<8x8xf32> -> vector<8x8xf32>
    %18 = vector.broadcast %16 : vector<1x8xf32> to vector<8x8xf32>
    %19 = arith.addf %17, %18 : vector<8x8xf32>
    %c0_15 = arith.constant 0 : index
    %c0_16 = arith.constant 0 : index
    %20 = vector.load %arg8[%c0_15, %c0_16] : memref<8x8xf32, #tpu.memory_space<vmem>>, vector<8x8xf32>
    tpu.vector_store %arg8[%c0_15, %c0_16], %19 {strides = array<i32>} : memref<8x8xf32, #tpu.memory_space<vmem>>, vector<8x8xf32>,
    return
  }
  func.func @transform_0(%arg0: i32) -> (i32, i32) {
    %c0_i32 = arith.constant 0 : i32
    %c0_i32_0 = arith.constant 0 : i32
    return %arg0, %c0_i32 : i32, i32
  }
  func.func @transform_1(%arg0: i32) -> (i32, i32) {
    %c0_i32 = arith.constant 0 : i32
    %c0_i32_0 = arith.constant 0 : i32
    %c0_i32_1 = arith.constant 0 : i32
    return %c0_i32, %c0_i32_0 : i32, i32
  }
  func.func @transform_2(%arg0: i32) -> (i32, i32) {
    %c0_i32 = arith.constant 0 : i32
    %c0_i32_0 = arith.constant 0 : i32
    %c0_i32_1 = arith.constant 0 : i32
    return %c0_i32, %c0_i32_0 : i32, i32
  }
  func.func @transform_3(%arg0: i32) -> (i32, i32) {
    %c0_i32 = arith.constant 0 : i32
    %c0_i32_0 = arith.constant 0 : i32
    %c0_i32_1 = arith.constant 0 : i32
    return %c0_i32, %c0_i32_0 : i32, i32
  }
  func.func @transform_4(%arg0: i32) -> (i32, i32) {
    %c0_i32 = arith.constant 0 : i32
    %c0_i32_0 = arith.constant 0 : i32
    %c0_i32_1 = arith.constant 0 : i32
    return %c0_i32, %c0_i32_0 : i32, i32
  }
  func.func @transform_5(%arg0: i32) -> (i32, i32) {
    %c0_i32 = arith.constant 0 : i32
    %c0_i32_0 = arith.constant 0 : i32
    %c0_i32_1 = arith.constant 0 : i32
    return %c0_i32, %c0_i32_0 : i32, i32
  }
  func.func @transform_6(%arg0: i32) -> (i32, i32) {
    %c0_i32 = arith.constant 0 : i32
    %c0_i32_0 = arith.constant 0 : i32
    %c0_i32_1 = arith.constant 0 : i32
    return %c0_i32, %c0_i32_0 : i32, i32
  }
  func.func @transform_7(%arg0: i32) -> (i32, i32) {
    %c0_i32 = arith.constant 0 : i32
    %c0_i32_0 = arith.constant 0 : i32
    return %arg0, %c0_i32 : i32, i32
  }
}

</mosaic_0001>

<llo_original>
// kernel: tpu_custom_call.1
$region0: #{tpu_custom_call.1}
  #allocation0 [shape = 'u32[]', space=smem, size = 0x4, offset = 0x4, fixed_abs, tag = 'smem constant byte address 0x4 - core index']
  #allocation1 [shape = 'u32[144,128]{1,0:T(1,128)}', space=vmem, size = 0x12000, scoped, tag = 'internal scratch']
  %s0 = inlined_call_operand.vmem [shape: bf16[8,64], index: 0, kind: input, shape index: {}]
  %s1 = inlined_call_operand.vmem [shape: bf16[64,32], index: 1, kind: input, shape index: {}]
  %s2 = inlined_call_operand.vmem [shape: f32[1,32], index: 2, kind: input, shape index: {}]
  %s3 = inlined_call_operand.vmem [shape: bf16[32,16], index: 3, kind: input, shape index: {}]
  %s4 = inlined_call_operand.vmem [shape: f32[1,16], index: 4, kind: input, shape index: {}]
  %s5 = inlined_call_operand.vmem [shape: bf16[16,8], index: 5, kind: input, shape index: {}]
  %s6 = inlined_call_operand.vmem [shape: f32[1,8], index: 6, kind: input, shape index: {}]
  %s7 = inlined_call_operand.hbm [shape: f32[8,8], index: 7, kind: output, shape index: {}]
  %s8 = sld [smem:[#allocation0]]
  $region38: #{tpu_custom_call.1} parent=0
    _
  %s10 = ssub.s32 1, %s8
  %s11 = scalar_select 0, %s10, %s8
  $region1: #{tpu_custom_call.1} parent=0
    #allocation2 [shape = 'u8[4096]{0}', space=vmem, size = 0x1000, scoped, tag = 'output window, operand 0, single buffered']
    #allocation3 [shape = 's32[1]{0}', space=sflag, size = 0x4, scoped, tag = 'scoped memory for tpu_custom_call.1']
    %12 = vsyncpa [#allocation3], 0
    // Predicated region
    $region2: #{tpu_custom_call.1} parent=1 // pred_check
      _
    $region3: #{tpu_custom_call.1} parent=1 // pred_check_branch
      %14 = sbr.rel (0) target = $region5
    $region4: #{tpu_custom_call.1} parent=1 // pred_region
      _
    $region5: #{tpu_custom_call.1} parent=1 // pred_fallthru
      _
    // Predicated region
    $region6: #{tpu_custom_call.1} parent=1 // pred_check
      _
    $region7: #{tpu_custom_call.1} parent=1 // pred_check_branch
      %16 = sbr.rel (0) target = $region9
    $region8: #{tpu_custom_call.1} parent=1 // pred_region
      _
    $region9: #{tpu_custom_call.1} parent=1 // pred_fallthru
      _
    // Predicated region
    $region10: #{tpu_custom_call.1} parent=1 // pred_check
      _
    $region11: #{tpu_custom_call.1} parent=1 // pred_check_branch
      %18 = sbr.rel (0) target = $region13
    $region12: #{tpu_custom_call.1} parent=1 // pred_region
      _
    $region13: #{tpu_custom_call.1} parent=1 // pred_fallthru
      _
    // Predicated region
    $region14: #{tpu_custom_call.1} parent=1 // pred_check
      _
    $region15: #{tpu_custom_call.1} parent=1 // pred_check_branch
      %20 = sbr.rel (0) target = $region17
    $region16: #{tpu_custom_call.1} parent=1 // pred_region
      _
    $region17: #{tpu_custom_call.1} parent=1 // pred_fallthru
      _
    // Predicated region
    $region18: #{tpu_custom_call.1} parent=1 // pred_check
      _
    $region19: #{tpu_custom_call.1} parent=1 // pred_check_branch
      %22 = sbr.rel (0) target = $region21
    $region20: #{tpu_custom_call.1} parent=1 // pred_region
      _
    $region21: #{tpu_custom_call.1} parent=1 // pred_fallthru
      _
    // Predicated region
    $region22: #{tpu_custom_call.1} parent=1 // pred_check
      _
    $region23: #{tpu_custom_call.1} parent=1 // pred_check_branch
      %24 = sbr.rel (0) target = $region25
    $region24: #{tpu_custom_call.1} parent=1 // pred_region
      _
    $region25: #{tpu_custom_call.1} parent=1 // pred_fallthru
      _
    // Predicated region
    $region26: #{tpu_custom_call.1} parent=1 // pred_check
      _
    $region27: #{tpu_custom_call.1} parent=1 // pred_check_branch
      %26 = sbr.rel (0) target = $region29
    $region28: #{tpu_custom_call.1} parent=1 // pred_region
      _
    $region29: #{tpu_custom_call.1} parent=1 // pred_fallthru
      _
    %v28 = vld [vmem:[%s0] sm:$0xf]
    %v29 = vld [vmem:[%s1] sm:$0xf]
    %v30 = vld [vmem:[%s1 + $0x4] sm:$0xf]
    %v31 = vld [vmem:[%s1 + $0x8] sm:$0xf]
    %v32 = vld [vmem:[%s1 + $0xc] sm:$0xf]
    %v33 = vld [vmem:[%s1 + $0x10] sm:$0xf]
    %v34 = vld [vmem:[%s1 + $0x14] sm:$0xf]
    %v35 = vld [vmem:[%s1 + $0x18] sm:$0xf]
    %v36 = vld [vmem:[%s1 + $0x1c] sm:$0xf]
    %v37 = vld [vmem:[%s2] sm:$0x1]
    %v39 = vlaneseq
    %v40 = vshrl.u32 %v39, 7
    %v41 = vsub.s32 0, %v40
    %v42 = vrot.slane %v37, %v41
    %v52 = vunpack.c.l.b16 %v29
    %v53 = vunpack.c.l.b16 %v30
    %v54 = vunpack.c.l.b16 %v31
    %v55 = vunpack.c.l.b16 %v32
    %v56 = vunpack.c.l.b16 %v33
    %v57 = vunpack.c.l.b16 %v34
    %v58 = vunpack.c.l.b16 %v35
    %v59 = vunpack.c.l.b16 %v36
    %v60 = vpack.c.b16 %v53, %v52
    %v61 = vpack.c.b16 %v55, %v54
    %v62 = vpack.c.b16 %v57, %v56
    %v63 = vpack.c.b16 %v59, %v58
    %vm68 = vcmask 523264
    %v70 = vsel %vm68, %v28, 0
    %72 = vmatprep.subr.bf16.mxu0 0
    %73 = vmatpush1.bf16.msra.mxu0 %v60
    %74 = vmatprep.subr.bf16.mxu0 0
    %75 = vmatpush1.bf16.msra.mxu0 %v61
    %76 = vmatprep.subr.bf16.mxu0 0
    %77 = vmatpush1.bf16.msra.mxu0 %v62
    %78 = vmatprep.subr.bf16.mxu0 0
    %79 = vmatpush1.bf16.msra.mxu0 %v63
    %80 = vmatprep.subr.bf16.mxu0 0
    %81 = vmatpush1.bf16.msra.mxu0 0
    %82 = vmatprep.subr.bf16.mxu0 0
    %83 = vmatpush1.bf16.msra.mxu0 0
    %84 = vmatprep.subr.bf16.mxu0 0
    %85 = vmatpush1.bf16.msra.mxu0 0
    %86 = vmatprep.subr.bf16.mxu0 0
    %87 = vmatpush1.bf16.msra.mxu0 0
    %88 = vmatprep.subr.bf16.mxu0 0
    %89 = vmatpush1.bf16.msra.mxu0 0
    %90 = vmatprep.subr.bf16.mxu0 0
    %91 = vmatpush1.bf16.msra.mxu0 0
    %92 = vmatprep.subr.bf16.mxu0 0
    %93 = vmatpush1.bf16.msra.mxu0 0
    %94 = vmatprep.subr.bf16.mxu0 0
    %95 = vmatpush1.bf16.msra.mxu0 0
    %96 = vmatprep.subr.bf16.mxu0 0
    %97 = vmatpush1.bf16.msra.mxu0 0
    %98 = vmatprep.subr.bf16.mxu0 0
    %99 = vmatpush1.bf16.msra.mxu0 0
    %100 = vmatprep.subr.bf16.mxu0 0
    %101 = vmatpush1.bf16.msra.mxu0 0
    %102 = vmatprep.subr.bf16.mxu0 0
    %103 = vmatpush1.bf16.msra.mxu0 0
    %104 = vmatprep.mubr.bf16.mxu0 0
    %105 = vmatmul.mubr.bf16.gmra.mrb[0].mxu0 %v70
    %v106 = vpop.f32.mrb[0].mxu0
    %v107 = vadd.f32 %v42, %v106
    %v108 = vpop.f32.mrb[0].mxu0
    %v109 = vpop.f32.mrb[0].mxu0
    %v110 = vpop.f32.mrb[0].mxu0
    %111 = vdwg.mxu0
    %v112 = vtanh.pop %v107
    %v113 = vpack.c.bf16 %v112, %v112
    %v114 = vld [vmem:[%s3] sm:$0xf]
    %v115 = vld [vmem:[%s3 + $0x4] sm:$0xf]
    %v116 = vld [vmem:[%s3 + $0x8] sm:$0xf]
    %v117 = vld [vmem:[%s3 + $0xc] sm:$0xf]
    %v118 = vld [vmem:[%s4] sm:$0x1]
    %v120 = vlaneseq
    %v121 = vshrl.u32 %v120, 7
    %v122 = vsub.s32 0, %v121
    %v123 = vrot.slane %v118, %v122
    %v129 = vunpack.c.l.b16 %v114
    %v130 = vunpack.c.l.b16 %v115
    %v131 = vunpack.c.l.b16 %v116
    %v132 = vunpack.c.l.b16 %v117
    %v133 = vpack.c.b16 %v130, %v129
    %v134 = vpack.c.b16 %v132, %v131
    %vm137 = vcmask 261120
    %v139 = vsel %vm137, %v113, 0
    %141 = vmatprep.subr.bf16.mxu0 0
    %142 = vmatpush1.bf16.msra.mxu0 %v133
    %143 = vmatprep.subr.bf16.mxu0 0
    %144 = vmatpush1.bf16.msra.mxu0 %v134
    %145 = vmatprep.subr.bf16.mxu0 0
    %146 = vmatpush1.bf16.msra.mxu0 0
    %147 = vmatprep.subr.bf16.mxu0 0
    %148 = vmatpush1.bf16.msra.mxu0 0
    %149 = vmatprep.subr.bf16.mxu0 0
    %150 = vmatpush1.bf16.msra.mxu0 0
    %151 = vmatprep.subr.bf16.mxu0 0
    %152 = vmatpush1.bf16.msra.mxu0 0
    %153 = vmatprep.subr.bf16.mxu0 0
    %154 = vmatpush1.bf16.msra.mxu0 0
    %155 = vmatprep.subr.bf16.mxu0 0
    %156 = vmatpush1.bf16.msra.mxu0 0
    %157 = vmatprep.subr.bf16.mxu0 0
    %158 = vmatpush1.bf16.msra.mxu0 0
    %159 = vmatprep.subr.bf16.mxu0 0
    %160 = vmatpush1.bf16.msra.mxu0 0
    %161 = vmatprep.subr.bf16.mxu0 0
    %162 = vmatpush1.bf16.msra.mxu0 0
    %163 = vmatprep.subr.bf16.mxu0 0
    %164 = vmatpush1.bf16.msra.mxu0 0
    %165 = vmatprep.subr.bf16.mxu0 0
    %166 = vmatpush1.bf16.msra.mxu0 0
    %167 = vmatprep.subr.bf16.mxu0 0
    %168 = vmatpush1.bf16.msra.mxu0 0
    %169 = vmatprep.subr.bf16.mxu0 0
    %170 = vmatpush1.bf16.msra.mxu0 0
    %171 = vmatprep.subr.bf16.mxu0 0
    %172 = vmatpush1.bf16.msra.mxu0 0
    %173 = vmatprep.mubr.bf16.mxu0 0
    %174 = vmatmul.mubr.bf16.gmra.mrb[0].mxu0 %v139
    %v175 = vpop.f32.mrb[0].mxu0
    %v176 = vadd.f32 %v123, %v175
    %v177 = vpop.f32.mrb[0].mxu0
    %v178 = vpop.f32.mrb[0].mxu0
    %v179 = vpop.f32.mrb[0].mxu0
    %180 = vdwg.mxu0
    %v181 = vtanh.pop %v176
    %v182 = vpack.c.bf16 %v181, %v181
    %v183 = vld [vmem:[%s5] sm:$0xf]
    %v184 = vld [vmem:[%s5 + $0x4] sm:$0xf]
    %v185 = vld [vmem:[%s6] sm:$0x1]
    %v187 = vlaneseq
    %v188 = vshrl.u32 %v187, 7
    %v189 = vsub.s32 0, %v188
    %v190 = vrot.slane %v185, %v189
    %v194 = vunpack.c.l.b16 %v183
    %v195 = vunpack.c.l.b16 %v184
    %v196 = vpack.c.b16 %v195, %v194
    %vm198 = vcmask 130048
    %v200 = vsel %vm198, %v182, 0
    %202 = vmatprep.subr.bf16.mxu0 0
    %203 = vmatpush1.bf16.msra.mxu0 %v196
    %204 = vmatprep.subr.bf16.mxu0 0
    %205 = vmatpush1.bf16.msra.mxu0 0
    %206 = vmatprep.subr.bf16.mxu0 0
    %207 = vmatpush1.bf16.msra.mxu0 0
    %208 = vmatprep.subr.bf16.mxu0 0
    %209 = vmatpush1.bf16.msra.mxu0 0
    %210 = vmatprep.subr.bf16.mxu0 0
    %211 = vmatpush1.bf16.msra.mxu0 0
    %212 = vmatprep.subr.bf16.mxu0 0
    %213 = vmatpush1.bf16.msra.mxu0 0
    %214 = vmatprep.subr.bf16.mxu0 0
    %215 = vmatpush1.bf16.msra.mxu0 0
    %216 = vmatprep.subr.bf16.mxu0 0
    %217 = vmatpush1.bf16.msra.mxu0 0
    %218 = vmatprep.subr.bf16.mxu0 0
    %219 = vmatpush1.bf16.msra.mxu0 0
    %220 = vmatprep.subr.bf16.mxu0 0
    %221 = vmatpush1.bf16.msra.mxu0 0
    %222 = vmatprep.subr.bf16.mxu0 0
    %223 = vmatpush1.bf16.msra.mxu0 0
    %224 = vmatprep.subr.bf16.mxu0 0
    %225 = vmatpush1.bf16.msra.mxu0 0
    %226 = vmatprep.subr.bf16.mxu0 0
    %227 = vmatpush1.bf16.msra.mxu0 0
    %228 = vmatprep.subr.bf16.mxu0 0
    %229 = vmatpush1.bf16.msra.mxu0 0
    %230 = vmatprep.subr.bf16.mxu0 0
    %231 = vmatpush1.bf16.msra.mxu0 0
    %232 = vmatprep.subr.bf16.mxu0 0
    %233 = vmatpush1.bf16.msra.mxu0 0
    %234 = vmatprep.mubr.bf16.mxu0 0
    %235 = vmatmul.mubr.bf16.gmra.mrb[0].mxu0 %v200
    %v236 = vpop.f32.mrb[0].mxu0
    %v237 = vadd.f32 %v190, %v236
    %v238 = vpop.f32.mrb[0].mxu0
    %v239 = vpop.f32.mrb[0].mxu0
    %v240 = vpop.f32.mrb[0].mxu0
    %241 = vdwg.mxu0
    %vm242 = vcmask 64512
    %243 = vst.msk [vmem:[#allocation2] sm:$0xff] %vm242, %v237
    // Predicated region
    $region30: #{tpu_custom_call.1} parent=1 // pred_check
      _
    $region31: #{tpu_custom_call.1} parent=1 // pred_check_branch
      %245 = sbr.rel (0) target = $region33
    $region32: #{tpu_custom_call.1} parent=1 // pred_region
      %s247 = ssub.s32 128, 128
      %248 = vsyncadd [#allocation3], %s247
      %s250 = sshll.u32 [#allocation2], 4
      %s251 = int_to_ptr.vmem [resolvable:$true] %s250
      %253 = dma.vmem_to_hbm [thread:$0]  %s251, 128, %s7, [#allocation3]
    $region33: #{tpu_custom_call.1} parent=1 // pred_fallthru
      _
    // Predicated region
    $region34: #{tpu_custom_call.1} parent=1 // pred_check
      _
    $region35: #{tpu_custom_call.1} parent=1 // pred_check_branch
      %255 = sbr.rel (0) target = $region37
    $region36: #{tpu_custom_call.1} parent=1 // pred_region
      %256 = dma.done [#allocation3], 128
    $region37: #{tpu_custom_call.1} parent=1 // pred_fallthru
      _
    %257 = vsyncpa [#allocation3], 1

</llo_original>
